<compile_context>
chip_gen: v7x
topology: tpu7x:2x2x1
jax: 0.10.0
libtpu: 0.0.40
codegen_flags: <defaults>
</compile_context>

<pallas_src>
import functools

import jax
import jax.numpy as jnp
from jax import lax
from jax.experimental import pallas as pl
from jax.experimental.pallas import tpu as pltpu


# ----------------------------- Pallas kernel --------------------------------
def _matmul_bias_act_kernel(w_ref, x_ref, b_ref, o_ref, *, relu):
    """One M-tile of Y = act(W @ X + b); bf16 operands, f32 accumulation."""
    acc = jnp.dot(w_ref[...], x_ref[...], preferred_element_type=jnp.float32)
    acc = acc + b_ref[...]                       # (N, 1) broadcast over lanes
    if relu:
        acc = jnp.maximum(acc, 0.0)
    o_ref[...] = acc.astype(o_ref.dtype)


def _round_up(x, m):
    return (x + m - 1) // m * m


def _pick_tile_m(M, K, N, tile_m, out_bytes):
    """M-tile width: multiple of 128, VMEM-safe (double-buffered), and >=2
    grid steps when M is big enough so v7x's second TensorCore gets work."""
    m128 = _round_up(M, 128)
    # 2x (double buffer) * (bf16 x tile + out tile) kept well under the 32 MiB
    # scoped-VMEM limit; weights/bias are resident and tiny (<60 KiB).
    budget = 20 * 1024 * 1024
    cap = budget // (2 * (K * 2 + N * out_bytes))
    cap = max(128, (cap // 128) * 128)
    tm = min(tile_m, m128, cap)
    if m128 >= 256 and tm >= m128:
        tm = _round_up(m128 // 2, 128)           # split so grid >= 2 (megacore)
    return tm


def matmul_nt(w_mat, b_vec, x_t, *, relu, out_dtype=jnp.float32, tile_m=4096):
    """y[N, M] = act(w_mat[N, K] @ x_t[K, M] + b).  M is tiled on the grid;
    the final block may be partial (masked) - no padding copies of x_t."""
    N, K = w_mat.shape
    K2, M = x_t.shape
    assert K == K2

    out_bytes = jnp.dtype(out_dtype).itemsize
    tm = _pick_tile_m(M, K, N, tile_m, out_bytes)
    grid_m = pl.cdiv(M, tm)

    w_bf = w_mat.astype(jnp.bfloat16)
    x_bf = x_t.astype(jnp.bfloat16)              # no-op when already bf16
    b2 = b_vec.reshape(N, 1).astype(jnp.float32)

    kern = functools.partial(_matmul_bias_act_kernel, relu=relu)
    return pl.pallas_call(
        kern,
        out_shape=jax.ShapeDtypeStruct((N, M), out_dtype),
        grid=(grid_m,),
        in_specs=[
            pl.BlockSpec((N, K), lambda i: (0, 0)),    # weights: VMEM-resident
            pl.BlockSpec((K, tm), lambda i: (0, i)),   # activations: M-tiled
            pl.BlockSpec((N, 1), lambda i: (0, 0)),    # bias: resident
        ],
        out_specs=pl.BlockSpec((N, tm), lambda i: (0, i)),
        compiler_params=pltpu.CompilerParams(
            dimension_semantics=("parallel",),
            vmem_limit_bytes=32 * 1024 * 1024,
        ),
        cost_estimate=pl.CostEstimate(
            flops=2 * N * K * M,
            transcendentals=0,
            bytes_accessed=(N * K * 2) + (K * M * 2)
                           + (N * M * out_bytes) + (N * 4),
        ),
    )(w_bf, x_bf, b2)


# ------------------------------ glue (JAX) -----------------------------------
def _im2col(x_chwb, K, S):
    """(C, H, W, B) -> (C*K*K, O*O*B).  Rows ordered (c, kh, kw) to match
    weight.reshape(Cout, -1); columns ordered (oh, ow, b) so the final flatten
    before the linear layer needs no transpose.  Done in bf16."""
    C, H, W, B = x_chwb.shape
    O = (H - K) // S + 1
    slices = []
    for kh in range(K):
        for kw in range(K):
            slices.append(
                lax.slice(x_chwb,
                          (0, kh, kw, 0),
                          (C, kh + S * (O - 1) + 1, kw + S * (O - 1) + 1, B),
                          (1, S, S, 1)))                    # (C, O, O, B)
    p = jnp.stack(slices, axis=1)                           # (C, K*K, O, O, B)
    return p.reshape(C * K * K, O * O * B), O


@jax.jit
def dqn_forward(params, x):
    """Equivalent of DQN.forward(x) with NCHW input x (values in [0, 255])."""
    w1, b1, w2, b2, w3, b3 = params
    B = x.shape[0]

    # Pack weights as (Cout, Cin*KH*KW); fold the 1/255 input scale into w1.
    w1m = (w1.reshape(16, -1) * (1.0 / 255.0)).astype(jnp.bfloat16)
    w2m = w2.reshape(32, -1).astype(jnp.bfloat16)
    w3m = w3.astype(jnp.bfloat16)

    # Channel-major, batch-innermost activations; cast to bf16 *before* the
    # im2col so the patch matrices are built at 2 B/elem.
    x_c = x.astype(jnp.bfloat16).transpose(1, 2, 3, 0)      # (4, H, W, B)

    # Conv2d(4, 16, 8, stride=4) + ReLU   (scale folded into w1m).
    cols1, o1 = _im2col(x_c, K=8, S=4)                      # (256, o1*o1*B)
    y1 = matmul_nt(w1m, b1, cols1, relu=True,
                   out_dtype=jnp.bfloat16).reshape(16, o1, o1, B)

    # Conv2d(16, 32, 4, stride=2) + ReLU.
    cols2, o2 = _im2col(y1, K=4, S=2)                       # (256, o2*o2*B)
    y2 = matmul_nt(w2m, b2, cols2, relu=True,
                   out_dtype=jnp.bfloat16)                  # (32, o2*o2*B)

    # Columns are already (oh, ow, b), so PyTorch's (c, h, w) flatten order is
    # a pure reshape - no transpose copy before the linear layer.
    flat_t = y2.reshape(32 * o2 * o2, B)                    # (feat, B)
    out = matmul_nt(w3m, b3, flat_t, relu=False,
                    out_dtype=jnp.float32)                  # (out_size, B)
    return out.T                                            # (B, out_size)


def init_params(key, input_size, output_size):
    o1 = (input_size - 8) // 4 + 1
    o2 = (o1 - 4) // 2 + 1
    feat = 32 * o2 * o2
    ks = jax.random.split(key, 6)
    w1 = jax.random.normal(ks[0], (16, 4, 8, 8), jnp.float32) * 0.05
    b1 = jax.random.normal(ks[1], (16,), jnp.float32) * 0.05
    w2 = jax.random.normal(ks[2], (32, 16, 4, 4), jnp.float32) * 0.05
    b2 = jax.random.normal(ks[3], (32,), jnp.float32) * 0.05
    w3 = jax.random.normal(ks[4], (output_size, feat), jnp.float32) * 0.05
    b3 = jax.random.normal(ks[5], (output_size,), jnp.float32) * 0.05
    return (w1, b1, w2, b2, w3, b3)


def dqn_reference(params, x):
    """Pure-JAX f32 reference identical to the PyTorch forward pass."""
    w1, b1, w2, b2, w3, b3 = params
    x = x / 255.0
    dn = ("NCHW", "OIHW", "NCHW")
    y = lax.conv_general_dilated(x, w1, (4, 4), "VALID", dimension_numbers=dn)
    y = jax.nn.relu(y + b1[None, :, None, None])
    y = lax.conv_general_dilated(y, w2, (2, 2), "VALID", dimension_numbers=dn)
    y = jax.nn.relu(y + b2[None, :, None, None])
    y = y.reshape(y.shape[0], -1)
    return y @ w3.T + b3


if __name__ == "__main__":
    # Small shapes consistent with the module: batch=2, channels=4, spatial=28
    # (28 is the smallest "nice" spatial size where both convs stay valid).
    batch, input_size, output_size = 2, 28, 6

    key = jax.random.PRNGKey(0)
    k_x, k_p = jax.random.split(key)
    x = jax.random.uniform(k_x, (batch, 4, input_size, input_size),
                           jnp.float32, minval=0.0, maxval=255.0)
    params = init_params(k_p, input_size, output_size)

    out = jax.block_until_ready(dqn_forward(params, x))
    ref = jax.block_until_ready(dqn_reference(params, x))

    assert out.shape == (batch, output_size)
    # bf16 MXU operands with f32 accumulation -> relaxed tolerance vs f32 ref.
    assert jnp.allclose(out, ref, atol=5e-2, rtol=5e-2), (out, ref)
    print("KERNEL_OK")
</pallas_src>

<mosaic_0001>
module attributes {stable_mosaic.version = 11 : i64} {
  func.func @_matmul_bias_act_kernel(%arg0: i32, %arg1: memref<16x256xbf16, #tpu.memory_space<vmem>>, %arg2: memref<256x128xbf16, #tpu.memory_space<vmem>>, %arg3: memref<16x1xf32, #tpu.memory_space<vmem>>, %arg4: memref<16x128xbf16, #tpu.memory_space<vmem>>) attributes {dimension_semantics = [#tpu.dimension_semantics<parallel>], iteration_bounds = array<i64: 1>, scalar_prefetch = 0 : i64, scratch_operands = 0 : i64, tpu.core_type = #tpu.core_type<tc>, window_params = [{pipeline_mode = #tpu.pipeline_mode<synchronous>, transform_indices = @transform_0, window_bounds = array<i64: 16, 256>}, {transform_indices = @transform_1, window_bounds = array<i64: 256, 128>}, {pipeline_mode = #tpu.pipeline_mode<synchronous>, transform_indices = @transform_2, window_bounds = array<i64: 16, 1>}, {transform_indices = @transform_3, window_bounds = array<i64: 16, 128>}]} {
    %c0 = arith.constant 0 : index
    %c0_0 = arith.constant 0 : index
    %0 = vector.load %arg1[%c0, %c0_0] : memref<16x256xbf16, #tpu.memory_space<vmem>>, vector<16x256xbf16>
    %c0_1 = arith.constant 0 : index
    %c0_2 = arith.constant 0 : index
    %1 = vector.load %arg2[%c0_1, %c0_2] : memref<256x128xbf16, #tpu.memory_space<vmem>>, vector<256x128xbf16>
    %cst = arith.constant dense<0.000000e+00> : vector<16x128xf32>
    %2 = tpu.matmul %0, %1, %cst {dimension_numbers = #tpu.dot_dimension_numbers<[1], [0], [0], [1], [0, 0, 1, 1], [], []>} : vector<16x256xbf16>, vector<256x128xbf16>, vector<16x128xf32> -> vector<16x128xf32>
    %c0_3 = arith.constant 0 : index
    %c0_4 = arith.constant 0 : index
    %3 = vector.load %arg3[%c0_3, %c0_4] : memref<16x1xf32, #tpu.memory_space<vmem>>, vector<16x1xf32>
    %4 = vector.broadcast %3 : vector<16x1xf32> to vector<16x128xf32>
    %5 = arith.addf %2, %4 : vector<16x128xf32>
    %cst_5 = arith.constant 0.000000e+00 : f32
    %6 = vector.broadcast %cst_5 : f32 to vector<16x128xf32>
    %7 = arith.maximumf %5, %6 : vector<16x128xf32>
    %8 = arith.truncf %7 : vector<16x128xf32> to vector<16x128xbf16>
    %c0_6 = arith.constant 0 : index
    %c0_7 = arith.constant 0 : index
    %9 = vector.load %arg4[%c0_6, %c0_7] : memref<16x128xbf16, #tpu.memory_space<vmem>>, vector<16x128xbf16>
    tpu.vector_store %arg4[%c0_6, %c0_7], %8 {strides = array<i32>} : memref<16x128xbf16, #tpu.memory_space<vmem>>, vector<16x128xbf16>,
    return
  }
  func.func @transform_0(%arg0: i32) -> (i32, i32) {
    %c0_i32 = arith.constant 0 : i32
    %c0_i32_0 = arith.constant 0 : i32
    %c0_i32_1 = arith.constant 0 : i32
    return %c0_i32, %c0_i32_0 : i32, i32
  }
  func.func @transform_1(%arg0: i32) -> (i32, i32) {
    %c0_i32 = arith.constant 0 : i32
    %c0_i32_0 = arith.constant 0 : i32
    return %c0_i32, %arg0 : i32, i32
  }
  func.func @transform_2(%arg0: i32) -> (i32, i32) {
    %c0_i32 = arith.constant 0 : i32
    %c0_i32_0 = arith.constant 0 : i32
    %c0_i32_1 = arith.constant 0 : i32
    return %c0_i32, %c0_i32_0 : i32, i32
  }
  func.func @transform_3(%arg0: i32) -> (i32, i32) {
    %c0_i32 = arith.constant 0 : i32
    %c0_i32_0 = arith.constant 0 : i32
    return %c0_i32, %arg0 : i32, i32
  }
}

module attributes {stable_mosaic.version = 11 : i64} {
  func.func @_matmul_bias_act_kernel(%arg0: i32, %arg1: memref<32x256xbf16, #tpu.memory_space<vmem>>, %arg2: memref<256x128xbf16, #tpu.memory_space<vmem>>, %arg3: memref<32x1xf32, #tpu.memory_space<vmem>>, %arg4: memref<32x128xbf16, #tpu.memory_space<vmem>>) attributes {dimension_semantics = [#tpu.dimension_semantics<parallel>], iteration_bounds = array<i64: 1>, scalar_prefetch = 0 : i64, scratch_operands = 0 : i64, tpu.core_type = #tpu.core_type<tc>, window_params = [{pipeline_mode = #tpu.pipeline_mode<synchronous>, transform_indices = @transform_0, window_bounds = array<i64: 32, 256>}, {transform_indices = @transform_1, window_bounds = array<i64: 256, 128>}, {pipeline_mode = #tpu.pipeline_mode<synchronous>, transform_indices = @transform_2, window_bounds = array<i64: 32, 1>}, {transform_indices = @transform_3, window_bounds = array<i64: 32, 128>}]} {
    %c0 = arith.constant 0 : index
    %c0_0 = arith.constant 0 : index
    %0 = vector.load %arg1[%c0, %c0_0] : memref<32x256xbf16, #tpu.memory_space<vmem>>, vector<32x256xbf16>
    %c0_1 = arith.constant 0 : index
    %c0_2 = arith.constant 0 : index
    %1 = vector.load %arg2[%c0_1, %c0_2] : memref<256x128xbf16, #tpu.memory_space<vmem>>, vector<256x128xbf16>
    %cst = arith.constant dense<0.000000e+00> : vector<32x128xf32>
    %2 = tpu.matmul %0, %1, %cst {dimension_numbers = #tpu.dot_dimension_numbers<[1], [0], [0], [1], [0, 0, 1, 1], [], []>} : vector<32x256xbf16>, vector<256x128xbf16>, vector<32x128xf32> -> vector<32x128xf32>
    %c0_3 = arith.constant 0 : index
    %c0_4 = arith.constant 0 : index
    %3 = vector.load %arg3[%c0_3, %c0_4] : memref<32x1xf32, #tpu.memory_space<vmem>>, vector<32x1xf32>
    %4 = vector.broadcast %3 : vector<32x1xf32> to vector<32x128xf32>
    %5 = arith.addf %2, %4 : vector<32x128xf32>
    %cst_5 = arith.constant 0.000000e+00 : f32
    %6 = vector.broadcast %cst_5 : f32 to vector<32x128xf32>
    %7 = arith.maximumf %5, %6 : vector<32x128xf32>
    %8 = arith.truncf %7 : vector<32x128xf32> to vector<32x128xbf16>
    %c0_6 = arith.constant 0 : index
    %c0_7 = arith.constant 0 : index
    %9 = vector.load %arg4[%c0_6, %c0_7] : memref<32x128xbf16, #tpu.memory_space<vmem>>, vector<32x128xbf16>
    tpu.vector_store %arg4[%c0_6, %c0_7], %8 {strides = array<i32>} : memref<32x128xbf16, #tpu.memory_space<vmem>>, vector<32x128xbf16>,
    return
  }
  func.func @transform_0(%arg0: i32) -> (i32, i32) {
    %c0_i32 = arith.constant 0 : i32
    %c0_i32_0 = arith.constant 0 : i32
    %c0_i32_1 = arith.constant 0 : i32
    return %c0_i32, %c0_i32_0 : i32, i32
  }
  func.func @transform_1(%arg0: i32) -> (i32, i32) {
    %c0_i32 = arith.constant 0 : i32
    %c0_i32_0 = arith.constant 0 : i32
    return %c0_i32, %arg0 : i32, i32
  }
  func.func @transform_2(%arg0: i32) -> (i32, i32) {
    %c0_i32 = arith.constant 0 : i32
    %c0_i32_0 = arith.constant 0 : i32
    %c0_i32_1 = arith.constant 0 : i32
    return %c0_i32, %c0_i32_0 : i32, i32
  }
  func.func @transform_3(%arg0: i32) -> (i32, i32) {
    %c0_i32 = arith.constant 0 : i32
    %c0_i32_0 = arith.constant 0 : i32
    return %c0_i32, %arg0 : i32, i32
  }
}

module attributes {stable_mosaic.version = 11 : i64} {
  func.func @_matmul_bias_act_kernel(%arg0: i32, %arg1: memref<6x128xbf16, #tpu.memory_space<vmem>>, %arg2: memref<128x128xbf16, #tpu.memory_space<vmem>>, %arg3: memref<6x1xf32, #tpu.memory_space<vmem>>, %arg4: memref<6x128xf32, #tpu.memory_space<vmem>>) attributes {dimension_semantics = [#tpu.dimension_semantics<parallel>], iteration_bounds = array<i64: 1>, scalar_prefetch = 0 : i64, scratch_operands = 0 : i64, tpu.core_type = #tpu.core_type<tc>, window_params = [{pipeline_mode = #tpu.pipeline_mode<synchronous>, transform_indices = @transform_0, window_bounds = array<i64: 6, 128>}, {transform_indices = @transform_1, window_bounds = array<i64: 128, 128>}, {pipeline_mode = #tpu.pipeline_mode<synchronous>, transform_indices = @transform_2, window_bounds = array<i64: 6, 1>}, {transform_indices = @transform_3, window_bounds = array<i64: 6, 128>}]} {
    %c0 = arith.constant 0 : index
    %c0_0 = arith.constant 0 : index
    %0 = vector.load %arg1[%c0, %c0_0] : memref<6x128xbf16, #tpu.memory_space<vmem>>, vector<6x128xbf16>
    %c0_1 = arith.constant 0 : index
    %c0_2 = arith.constant 0 : index
    %1 = vector.load %arg2[%c0_1, %c0_2] : memref<128x128xbf16, #tpu.memory_space<vmem>>, vector<128x128xbf16>
    %cst = arith.constant dense<0.000000e+00> : vector<6x128xf32>
    %2 = tpu.matmul %0, %1, %cst {dimension_numbers = #tpu.dot_dimension_numbers<[1], [0], [0], [1], [0, 0, 1, 1], [], []>} : vector<6x128xbf16>, vector<128x128xbf16>, vector<6x128xf32> -> vector<6x128xf32>
    %c0_3 = arith.constant 0 : index
    %c0_4 = arith.constant 0 : index
    %3 = vector.load %arg3[%c0_3, %c0_4] : memref<6x1xf32, #tpu.memory_space<vmem>>, vector<6x1xf32>
    %4 = vector.broadcast %3 : vector<6x1xf32> to vector<6x128xf32>
    %5 = arith.addf %2, %4 : vector<6x128xf32>
    %c0_5 = arith.constant 0 : index
    %c0_6 = arith.constant 0 : index
    %6 = vector.load %arg4[%c0_5, %c0_6] : memref<6x128xf32, #tpu.memory_space<vmem>>, vector<6x128xf32>
    tpu.vector_store %arg4[%c0_5, %c0_6], %5 {strides = array<i32>} : memref<6x128xf32, #tpu.memory_space<vmem>>, vector<6x128xf32>,
    return
  }
  func.func @transform_0(%arg0: i32) -> (i32, i32) {
    %c0_i32 = arith.constant 0 : i32
    %c0_i32_0 = arith.constant 0 : i32
    %c0_i32_1 = arith.constant 0 : i32
    return %c0_i32, %c0_i32_0 : i32, i32
  }
  func.func @transform_1(%arg0: i32) -> (i32, i32) {
    %c0_i32 = arith.constant 0 : i32
    %c0_i32_0 = arith.constant 0 : i32
    return %c0_i32, %arg0 : i32, i32
  }
  func.func @transform_2(%arg0: i32) -> (i32, i32) {
    %c0_i32 = arith.constant 0 : i32
    %c0_i32_0 = arith.constant 0 : i32
    %c0_i32_1 = arith.constant 0 : i32
    return %c0_i32, %c0_i32_0 : i32, i32
  }
  func.func @transform_3(%arg0: i32) -> (i32, i32) {
    %c0_i32 = arith.constant 0 : i32
    %c0_i32_0 = arith.constant 0 : i32
    return %c0_i32, %arg0 : i32, i32
  }
}

</mosaic_0001>

<llo_original>
// kernel: dqn_forward.3
$region0: #{dqn_forward.3}
  #allocation0 [shape = 'u32[]', space=smem, size = 0x4, offset = 0x4, fixed_abs, tag = 'smem constant byte address 0x4 - core index']
  #allocation1 [shape = 'u32[144,128]{1,0:T(1,128)}', space=vmem, size = 0x12000, scoped, tag = 'internal scratch']
  %s0 = inlined_call_operand.vmem [shape: bf16[16,256], index: 0, kind: input, shape index: {}]
  %s1 = inlined_call_operand.vmem [shape: bf16[256,72], index: 1, kind: input, shape index: {}]
  %s2 = inlined_call_operand.vmem [shape: f32[16,1], index: 2, kind: input, shape index: {}]
  %s3 = inlined_call_operand.vmem [shape: bf16[16,72], index: 3, kind: output, shape index: {}]
  %s4 = sld [smem:[#allocation0]]
  $region22: #{dqn_forward.3} parent=0
    _
  %s6 = ssub.s32 1, %s4
  %s7 = scalar_select 0, %s6, %s4
  // Predicated region
  $region2: #{dqn_forward.3} parent=0 // pred_check
    _
  $region3: #{dqn_forward.3} parent=0 // pred_check_branch
    %9 = sbr.rel (0) target = $region5
  $region4: #{dqn_forward.3} parent=0 // pred_region
    _
  $region5: #{dqn_forward.3} parent=0 // pred_fallthru
    _
  // Predicated region
  $region6: #{dqn_forward.3} parent=0 // pred_check
    _
  $region7: #{dqn_forward.3} parent=0 // pred_check_branch
    %11 = sbr.rel (0) target = $region9
  $region8: #{dqn_forward.3} parent=0 // pred_region
    _
  $region9: #{dqn_forward.3} parent=0 // pred_fallthru
    _
  // Predicated region
  $region10: #{dqn_forward.3} parent=0 // pred_check
    _
  $region11: #{dqn_forward.3} parent=0 // pred_check_branch
    %13 = sbr.rel (0) target = $region13
  $region12: #{dqn_forward.3} parent=0 // pred_region
    _
  $region13: #{dqn_forward.3} parent=0 // pred_fallthru
    _
  %v15 = vld [vmem:[%s0] sm:$0xff]
  %v16 = vld [vmem:[%s0 + $0x8] sm:$0xff]
  %v17 = vld [vmem:[%s1] sm:$0xf]
  %v18 = vld [vmem:[%s1 + $0x4] sm:$0xf]
  %v19 = vld [vmem:[%s1 + $0x8] sm:$0xf]
  %v20 = vld [vmem:[%s1 + $0xc] sm:$0xf]
  %v21 = vld [vmem:[%s1 + $0x10] sm:$0xf]
  %v22 = vld [vmem:[%s1 + $0x14] sm:$0xf]
  %v23 = vld [vmem:[%s1 + $0x18] sm:$0xf]
  %v24 = vld [vmem:[%s1 + $0x1c] sm:$0xf]
  %v25 = vld [vmem:[%s1 + $0x20] sm:$0xf]
  %v26 = vld [vmem:[%s1 + $0x24] sm:$0xf]
  %v27 = vld [vmem:[%s1 + $0x28] sm:$0xf]
  %v28 = vld [vmem:[%s1 + $0x2c] sm:$0xf]
  %v29 = vld [vmem:[%s1 + $0x30] sm:$0xf]
  %v30 = vld [vmem:[%s1 + $0x34] sm:$0xf]
  %v31 = vld [vmem:[%s1 + $0x38] sm:$0xf]
  %v32 = vld [vmem:[%s1 + $0x3c] sm:$0xf]
  %v33 = vld [vmem:[%s1 + $0x40] sm:$0xf]
  %v34 = vld [vmem:[%s1 + $0x44] sm:$0xf]
  %v35 = vld [vmem:[%s1 + $0x48] sm:$0xf]
  %v36 = vld [vmem:[%s1 + $0x4c] sm:$0xf]
  %v37 = vld [vmem:[%s1 + $0x50] sm:$0xf]
  %v38 = vld [vmem:[%s1 + $0x54] sm:$0xf]
  %v39 = vld [vmem:[%s1 + $0x58] sm:$0xf]
  %v40 = vld [vmem:[%s1 + $0x5c] sm:$0xf]
  %v41 = vld [vmem:[%s1 + $0x60] sm:$0xf]
  %v42 = vld [vmem:[%s1 + $0x64] sm:$0xf]
  %v43 = vld [vmem:[%s1 + $0x68] sm:$0xf]
  %v44 = vld [vmem:[%s1 + $0x6c] sm:$0xf]
  %v45 = vld [vmem:[%s1 + $0x70] sm:$0xf]
  %v46 = vld [vmem:[%s1 + $0x74] sm:$0xf]
  %v47 = vld [vmem:[%s1 + $0x78] sm:$0xf]
  %v48 = vld [vmem:[%s1 + $0x7c] sm:$0xf]
  %v49 = vld [vmem:[%s2] sm:$0xff]
  %v50 = vld [vmem:[%s2 + $0x8] sm:$0xff]
  %52 = vset.pattern.permute.xlu0 0
  %53 = vperm.xlu0 %52, %v49
  %v54 = vpop.permute.xlu0 %53
  %57 = vset.pattern.permute.xlu0 0
  %58 = vperm.xlu0 %57, %v50
  %v59 = vpop.permute.xlu0 %58
  %v63 = vunpack.c.l.b16 %v15
  %v64 = vunpack.c.h.b16 %v15
  %v65 = vunpack.c.l.b16 %v16
  %v66 = vunpack.c.h.b16 %v16
  %v67 = vpack.c.b16 %v65, %v63
  %v68 = vpack.c.b16 %v66, %v64
  %v103 = vunpack.c.l.b16 %v17
  %v104 = vunpack.c.l.b16 %v18
  %v105 = vunpack.c.l.b16 %v19
  %v106 = vunpack.c.l.b16 %v20
  %v107 = vunpack.c.l.b16 %v21
  %v108 = vunpack.c.l.b16 %v22
  %v109 = vunpack.c.l.b16 %v23
  %v110 = vunpack.c.l.b16 %v24
  %v111 = vunpack.c.l.b16 %v25
  %v112 = vunpack.c.l.b16 %v26
  %v113 = vunpack.c.l.b16 %v27
  %v114 = vunpack.c.l.b16 %v28
  %v115 = vunpack.c.l.b16 %v29
  %v116 = vunpack.c.l.b16 %v30
  %v117 = vunpack.c.l.b16 %v31
  %v118 = vunpack.c.l.b16 %v32
  %v119 = vunpack.c.l.b16 %v33
  %v120 = vunpack.c.l.b16 %v34
  %v121 = vunpack.c.l.b16 %v35
  %v122 = vunpack.c.l.b16 %v36
  %v123 = vunpack.c.l.b16 %v37
  %v124 = vunpack.c.l.b16 %v38
  %v125 = vunpack.c.l.b16 %v39
  %v126 = vunpack.c.l.b16 %v40
  %v127 = vunpack.c.l.b16 %v41
  %v128 = vunpack.c.l.b16 %v42
  %v129 = vunpack.c.l.b16 %v43
  %v130 = vunpack.c.l.b16 %v44
  %v131 = vunpack.c.l.b16 %v45
  %v132 = vunpack.c.l.b16 %v46
  %v133 = vunpack.c.l.b16 %v47
  %v134 = vunpack.c.l.b16 %v48
  %v135 = vpack.c.b16 %v104, %v103
  %v136 = vpack.c.b16 %v106, %v105
  %v137 = vpack.c.b16 %v108, %v107
  %v138 = vpack.c.b16 %v110, %v109
  %v139 = vpack.c.b16 %v112, %v111
  %v140 = vpack.c.b16 %v114, %v113
  %v141 = vpack.c.b16 %v116, %v115
  %v142 = vpack.c.b16 %v118, %v117
  %v143 = vpack.c.b16 %v120, %v119
  %v144 = vpack.c.b16 %v122, %v121
  %v145 = vpack.c.b16 %v124, %v123
  %v146 = vpack.c.b16 %v126, %v125
  %v147 = vpack.c.b16 %v128, %v127
  %v148 = vpack.c.b16 %v130, %v129
  %v149 = vpack.c.b16 %v132, %v131
  %v150 = vpack.c.b16 %v134, %v133
  %167 = vmatprep.subr.bf16.mxu0 0
  %168 = vmatpush1.bf16.msra.mxu0 %v135
  %169 = vmatprep.subr.bf16.mxu0 0
  %170 = vmatpush1.bf16.msra.mxu0 %v136
  %171 = vmatprep.subr.bf16.mxu0 0
  %172 = vmatpush1.bf16.msra.mxu0 %v137
  %173 = vmatprep.subr.bf16.mxu0 0
  %174 = vmatpush1.bf16.msra.mxu0 %v138
  %175 = vmatprep.subr.bf16.mxu0 0
  %176 = vmatpush1.bf16.msra.mxu0 %v139
  %177 = vmatprep.subr.bf16.mxu0 0
  %178 = vmatpush1.bf16.msra.mxu0 %v140
  %179 = vmatprep.subr.bf16.mxu0 0
  %180 = vmatpush1.bf16.msra.mxu0 %v141
  %181 = vmatprep.subr.bf16.mxu0 0
  %182 = vmatpush1.bf16.msra.mxu0 %v142
  %183 = vmatprep.subr.bf16.mxu0 0
  %184 = vmatpush1.bf16.msra.mxu0 %v143
  %185 = vmatprep.subr.bf16.mxu0 0
  %186 = vmatpush1.bf16.msra.mxu0 %v144
  %187 = vmatprep.subr.bf16.mxu0 0
  %188 = vmatpush1.bf16.msra.mxu0 %v145
  %189 = vmatprep.subr.bf16.mxu0 0
  %190 = vmatpush1.bf16.msra.mxu0 %v146
  %191 = vmatprep.subr.bf16.mxu0 0
  %192 = vmatpush1.bf16.msra.mxu0 %v147
  %193 = vmatprep.subr.bf16.mxu0 0
  %194 = vmatpush1.bf16.msra.mxu0 %v148
  %195 = vmatprep.subr.bf16.mxu0 0
  %196 = vmatpush1.bf16.msra.mxu0 %v149
  %197 = vmatprep.subr.bf16.mxu0 0
  %198 = vmatpush1.bf16.msra.mxu0 %v150
  %199 = vmatprep.mubr.bf16.mxu0 %v68
  %200 = vmatmul.mubr.bf16.gmra.mrb[0].mxu0 %v67
  %v201 = vpop.f32.mrb[0].mxu0
  %v202 = vadd.f32 %v54, %v201
  %v203 = vpop.f32.mrb[0].mxu0
  %v204 = vpop.f32.mrb[0].mxu0
  %v205 = vadd.f32 %v59, %v204
  %v206 = vpop.f32.mrb[0].mxu0
  %207 = vdwg.mxu0
  %v208 = vmax.f32 %v202, 0.0
  %v209 = vmax.f32 %v205, 0.0
  %v210 = vpack.c.bf16 %v209, %v208
  %v212 = vunpack.c.l.b16 %v210
  %v213 = vunpack.c.h.b16 %v210
  %v214 = vpack.c.b16 %v212, %v212
  %v215 = vpack.c.b16 %v213, %v213
  %218 = vst [vmem:[%s3] sm:$0xf] %v214
  %219 = vst [vmem:[%s3 + $0x4] sm:$0xf] %v215
  // Predicated region
  $region14: #{dqn_forward.3} parent=0 // pred_check
    _
  $region15: #{dqn_forward.3} parent=0 // pred_check_branch
    %221 = sbr.rel (0) target = $region17
  $region16: #{dqn_forward.3} parent=0 // pred_region
    _
  $region17: #{dqn_forward.3} parent=0 // pred_fallthru
    _
  // Predicated region
  $region18: #{dqn_forward.3} parent=0 // pred_check
    _
  $region19: #{dqn_forward.3} parent=0 // pred_check_branch
    %223 = sbr.rel (0) target = $region21
  $region20: #{dqn_forward.3} parent=0 // pred_region
    _
  $region21: #{dqn_forward.3} parent=0 // pred_fallthru
    _

// kernel: dqn_forward.4
$region0: #{dqn_forward.4}
  #allocation0 [shape = 'u32[]', space=smem, size = 0x4, offset = 0x4, fixed_abs, tag = 'smem constant byte address 0x4 - core index']
  #allocation1 [shape = 'u32[144,128]{1,0:T(1,128)}', space=vmem, size = 0x12000, scoped, tag = 'internal scratch']
  %s0 = inlined_call_operand.vmem [shape: bf16[32,256], index: 0, kind: input, shape index: {}]
  %s1 = inlined_call_operand.vmem [shape: bf16[256,8], index: 1, kind: input, shape index: {}]
  %s2 = inlined_call_operand.vmem [shape: f32[32,1], index: 2, kind: input, shape index: {}]
  %s3 = inlined_call_operand.vmem [shape: bf16[32,8], index: 3, kind: output, shape index: {}]
  %s4 = sld [smem:[#allocation0]]
  $region22: #{dqn_forward.4} parent=0
    _
  %s6 = ssub.s32 1, %s4
  %s7 = scalar_select 0, %s6, %s4
  // Predicated region
  $region2: #{dqn_forward.4} parent=0 // pred_check
    _
  $region3: #{dqn_forward.4} parent=0 // pred_check_branch
    %9 = sbr.rel (0) target = $region5
  $region4: #{dqn_forward.4} parent=0 // pred_region
    _
  $region5: #{dqn_forward.4} parent=0 // pred_fallthru
    _
  // Predicated region
  $region6: #{dqn_forward.4} parent=0 // pred_check
    _
  $region7: #{dqn_forward.4} parent=0 // pred_check_branch
    %11 = sbr.rel (0) target = $region9
  $region8: #{dqn_forward.4} parent=0 // pred_region
    _
  $region9: #{dqn_forward.4} parent=0 // pred_fallthru
    _
  // Predicated region
  $region10: #{dqn_forward.4} parent=0 // pred_check
    _
  $region11: #{dqn_forward.4} parent=0 // pred_check_branch
    %13 = sbr.rel (0) target = $region13
  $region12: #{dqn_forward.4} parent=0 // pred_region
    _
  $region13: #{dqn_forward.4} parent=0 // pred_fallthru
    _
  %v15 = vld [vmem:[%s0] sm:$0xff]
  %v16 = vld [vmem:[%s0 + $0x8] sm:$0xff]
  %v17 = vld [vmem:[%s0 + $0x10] sm:$0xff]
  %v18 = vld [vmem:[%s0 + $0x18] sm:$0xff]
  %v19 = vld [vmem:[%s1] sm:$0xf]
  %v20 = vld [vmem:[%s1 + $0x4] sm:$0xf]
  %v21 = vld [vmem:[%s1 + $0x8] sm:$0xf]
  %v22 = vld [vmem:[%s1 + $0xc] sm:$0xf]
  %v23 = vld [vmem:[%s1 + $0x10] sm:$0xf]
  %v24 = vld [vmem:[%s1 + $0x14] sm:$0xf]
  %v25 = vld [vmem:[%s1 + $0x18] sm:$0xf]
  %v26 = vld [vmem:[%s1 + $0x1c] sm:$0xf]
  %v27 = vld [vmem:[%s1 + $0x20] sm:$0xf]
  %v28 = vld [vmem:[%s1 + $0x24] sm:$0xf]
  %v29 = vld [vmem:[%s1 + $0x28] sm:$0xf]
  %v30 = vld [vmem:[%s1 + $0x2c] sm:$0xf]
  %v31 = vld [vmem:[%s1 + $0x30] sm:$0xf]
  %v32 = vld [vmem:[%s1 + $0x34] sm:$0xf]
  %v33 = vld [vmem:[%s1 + $0x38] sm:$0xf]
  %v34 = vld [vmem:[%s1 + $0x3c] sm:$0xf]
  %v35 = vld [vmem:[%s1 + $0x40] sm:$0xf]
  %v36 = vld [vmem:[%s1 + $0x44] sm:$0xf]
  %v37 = vld [vmem:[%s1 + $0x48] sm:$0xf]
  %v38 = vld [vmem:[%s1 + $0x4c] sm:$0xf]
  %v39 = vld [vmem:[%s1 + $0x50] sm:$0xf]
  %v40 = vld [vmem:[%s1 + $0x54] sm:$0xf]
  %v41 = vld [vmem:[%s1 + $0x58] sm:$0xf]
  %v42 = vld [vmem:[%s1 + $0x5c] sm:$0xf]
  %v43 = vld [vmem:[%s1 + $0x60] sm:$0xf]
  %v44 = vld [vmem:[%s1 + $0x64] sm:$0xf]
  %v45 = vld [vmem:[%s1 + $0x68] sm:$0xf]
  %v46 = vld [vmem:[%s1 + $0x6c] sm:$0xf]
  %v47 = vld [vmem:[%s1 + $0x70] sm:$0xf]
  %v48 = vld [vmem:[%s1 + $0x74] sm:$0xf]
  %v49 = vld [vmem:[%s1 + $0x78] sm:$0xf]
  %v50 = vld [vmem:[%s1 + $0x7c] sm:$0xf]
  %v51 = vld [vmem:[%s2] sm:$0xff]
  %v52 = vld [vmem:[%s2 + $0x8] sm:$0xff]
  %v53 = vld [vmem:[%s2 + $0x10] sm:$0xff]
  %v54 = vld [vmem:[%s2 + $0x18] sm:$0xff]
  %56 = vset.pattern.permute.xlu0 0
  %57 = vperm.xlu0 %56, %v51
  %v58 = vpop.permute.xlu0 %57
  %61 = vset.pattern.permute.xlu0 0
  %62 = vperm.xlu0 %61, %v52
  %v63 = vpop.permute.xlu0 %62
  %66 = vset.pattern.permute.xlu0 0
  %67 = vperm.xlu0 %66, %v53
  %v68 = vpop.permute.xlu0 %67
  %71 = vset.pattern.permute.xlu0 0
  %72 = vperm.xlu0 %71, %v54
  %v73 = vpop.permute.xlu0 %72
  %v79 = vunpack.c.l.b16 %v15
  %v80 = vunpack.c.h.b16 %v15
  %v81 = vunpack.c.l.b16 %v16
  %v82 = vunpack.c.h.b16 %v16
  %v83 = vunpack.c.l.b16 %v17
  %v84 = vunpack.c.h.b16 %v17
  %v85 = vunpack.c.l.b16 %v18
  %v86 = vunpack.c.h.b16 %v18
  %v87 = vpack.c.b16 %v81, %v79
  %v88 = vpack.c.b16 %v82, %v80
  %v89 = vpack.c.b16 %v85, %v83
  %v90 = vpack.c.b16 %v86, %v84
  %v127 = vunpack.c.l.b16 %v19
  %v128 = vunpack.c.l.b16 %v20
  %v129 = vunpack.c.l.b16 %v21
  %v130 = vunpack.c.l.b16 %v22
  %v131 = vunpack.c.l.b16 %v23
  %v132 = vunpack.c.l.b16 %v24
  %v133 = vunpack.c.l.b16 %v25
  %v134 = vunpack.c.l.b16 %v26
  %v135 = vunpack.c.l.b16 %v27
  %v136 = vunpack.c.l.b16 %v28
  %v137 = vunpack.c.l.b16 %v29
  %v138 = vunpack.c.l.b16 %v30
  %v139 = vunpack.c.l.b16 %v31
  %v140 = vunpack.c.l.b16 %v32
  %v141 = vunpack.c.l.b16 %v33
  %v142 = vunpack.c.l.b16 %v34
  %v143 = vunpack.c.l.b16 %v35
  %v144 = vunpack.c.l.b16 %v36
  %v145 = vunpack.c.l.b16 %v37
  %v146 = vunpack.c.l.b16 %v38
  %v147 = vunpack.c.l.b16 %v39
  %v148 = vunpack.c.l.b16 %v40
  %v149 = vunpack.c.l.b16 %v41
  %v150 = vunpack.c.l.b16 %v42
  %v151 = vunpack.c.l.b16 %v43
  %v152 = vunpack.c.l.b16 %v44
  %v153 = vunpack.c.l.b16 %v45
  %v154 = vunpack.c.l.b16 %v46
  %v155 = vunpack.c.l.b16 %v47
  %v156 = vunpack.c.l.b16 %v48
  %v157 = vunpack.c.l.b16 %v49
  %v158 = vunpack.c.l.b16 %v50
  %v159 = vpack.c.b16 %v128, %v127
  %v160 = vpack.c.b16 %v130, %v129
  %v161 = vpack.c.b16 %v132, %v131
  %v162 = vpack.c.b16 %v134, %v133
  %v163 = vpack.c.b16 %v136, %v135
  %v164 = vpack.c.b16 %v138, %v137
  %v165 = vpack.c.b16 %v140, %v139
  %v166 = vpack.c.b16 %v142, %v141
  %v167 = vpack.c.b16 %v144, %v143
  %v168 = vpack.c.b16 %v146, %v145
  %v169 = vpack.c.b16 %v148, %v147
  %v170 = vpack.c.b16 %v150, %v149
  %v171 = vpack.c.b16 %v152, %v151
  %v172 = vpack.c.b16 %v154, %v153
  %v173 = vpack.c.b16 %v156, %v155
  %v174 = vpack.c.b16 %v158, %v157
  %191 = vmatprep.subr.bf16.mxu0 0
  %192 = vmatpush1.bf16.msra.mxu0 %v159
  %193 = vmatprep.subr.bf16.mxu0 0
  %194 = vmatpush1.bf16.msra.mxu0 %v160
  %195 = vmatprep.subr.bf16.mxu0 0
  %196 = vmatpush1.bf16.msra.mxu0 %v161
  %197 = vmatprep.subr.bf16.mxu0 0
  %198 = vmatpush1.bf16.msra.mxu0 %v162
  %199 = vmatprep.subr.bf16.mxu0 0
  %200 = vmatpush1.bf16.msra.mxu0 %v163
  %201 = vmatprep.subr.bf16.mxu0 0
  %202 = vmatpush1.bf16.msra.mxu0 %v164
  %203 = vmatprep.subr.bf16.mxu0 0
  %204 = vmatpush1.bf16.msra.mxu0 %v165
  %205 = vmatprep.subr.bf16.mxu0 0
  %206 = vmatpush1.bf16.msra.mxu0 %v166
  %207 = vmatprep.subr.bf16.mxu0 0
  %208 = vmatpush1.bf16.msra.mxu0 %v167
  %209 = vmatprep.subr.bf16.mxu0 0
  %210 = vmatpush1.bf16.msra.mxu0 %v168
  %211 = vmatprep.subr.bf16.mxu0 0
  %212 = vmatpush1.bf16.msra.mxu0 %v169
  %213 = vmatprep.subr.bf16.mxu0 0
  %214 = vmatpush1.bf16.msra.mxu0 %v170
  %215 = vmatprep.subr.bf16.mxu0 0
  %216 = vmatpush1.bf16.msra.mxu0 %v171
  %217 = vmatprep.subr.bf16.mxu0 0
  %218 = vmatpush1.bf16.msra.mxu0 %v172
  %219 = vmatprep.subr.bf16.mxu0 0
  %220 = vmatpush1.bf16.msra.mxu0 %v173
  %221 = vmatprep.subr.bf16.mxu0 0
  %222 = vmatpush1.bf16.msra.mxu0 %v174
  %223 = vmatprep.mubr.bf16.mxu0 %v88
  %224 = vmatmul.mubr.bf16.gmra.mrb[0].mxu0 %v87
  %v225 = vpop.f32.mrb[0].mxu0
  %v226 = vadd.f32 %v58, %v225
  %v227 = vpop.f32.mrb[0].mxu0
  %v228 = vpop.f32.mrb[0].mxu0
  %v229 = vadd.f32 %v63, %v228
  %v230 = vpop.f32.mrb[0].mxu0
  %231 = vmatprep.mubr.bf16.mxu0 %v90
  %232 = vmatmul.mubr.bf16.gmra.mrb[0].mxu0 %v89
  %v233 = vpop.f32.mrb[0].mxu0
  %v234 = vadd.f32 %v68, %v233
  %v235 = vpop.f32.mrb[0].mxu0
  %v236 = vpop.f32.mrb[0].mxu0
  %v237 = vadd.f32 %v73, %v236
  %v238 = vpop.f32.mrb[0].mxu0
  %239 = vdwg.mxu0
  %v240 = vmax.f32 %v226, 0.0
  %v241 = vmax.f32 %v229, 0.0
  %v242 = vmax.f32 %v234, 0.0
  %v243 = vmax.f32 %v237, 0.0
  %v244 = vpack.c.bf16 %v241, %v240
  %v245 = vpack.c.bf16 %v243, %v242
  %v248 = vunpack.c.l.b16 %v244
  %v249 = vunpack.c.h.b16 %v244
  %v250 = vunpack.c.l.b16 %v245
  %v251 = vunpack.c.h.b16 %v245
  %v252 = vpack.c.b16 %v248, %v248
  %v253 = vpack.c.b16 %v249, %v249
  %v254 = vpack.c.b16 %v250, %v250
  %v255 = vpack.c.b16 %v251, %v251
  %260 = vst [vmem:[%s3] sm:$0xf] %v252
  %261 = vst [vmem:[%s3 + $0x4] sm:$0xf] %v253
  %262 = vst [vmem:[%s3 + $0x8] sm:$0xf] %v254
  %263 = vst [vmem:[%s3 + $0xc] sm:$0xf] %v255
  // Predicated region
  $region14: #{dqn_forward.4} parent=0 // pred_check
    _
  $region15: #{dqn_forward.4} parent=0 // pred_check_branch
    %265 = sbr.rel (0) target = $region17
  $region16: #{dqn_forward.4} parent=0 // pred_region
    _
  $region17: #{dqn_forward.4} parent=0 // pred_fallthru
    _
  // Predicated region
  $region18: #{dqn_forward.4} parent=0 // pred_check
    _
  $region19: #{dqn_forward.4} parent=0 // pred_check_branch
    %267 = sbr.rel (0) target = $region21
  $region20: #{dqn_forward.4} parent=0 // pred_region
    _
  $region21: #{dqn_forward.4} parent=0 // pred_fallthru
    _

// kernel: dqn_forward.5
$region0: #{dqn_forward.5}
  #allocation0 [shape = 'u32[]', space=smem, size = 0x4, offset = 0x4, fixed_abs, tag = 'smem constant byte address 0x4 - core index']
  #allocation1 [shape = 'u32[144,128]{1,0:T(1,128)}', space=vmem, size = 0x12000, scoped, tag = 'internal scratch']
  %s0 = inlined_call_operand.vmem [shape: bf16[6,128], index: 0, kind: input, shape index: {}]
  %s1 = inlined_call_operand.vmem [shape: bf16[128,2], index: 1, kind: input, shape index: {}]
  %s2 = inlined_call_operand.vmem [shape: f32[6,1], index: 2, kind: input, shape index: {}]
  %s3 = inlined_call_operand.vmem [shape: f32[6,2], index: 3, kind: output, shape index: {}]
  %s4 = sld [smem:[#allocation0]]
  $region22: #{dqn_forward.5} parent=0
    _
  %s6 = ssub.s32 1, %s4
  %s7 = scalar_select 0, %s6, %s4
  // Predicated region
  $region2: #{dqn_forward.5} parent=0 // pred_check
    _
  $region3: #{dqn_forward.5} parent=0 // pred_check_branch
    %9 = sbr.rel (0) target = $region5
  $region4: #{dqn_forward.5} parent=0 // pred_region
    _
  $region5: #{dqn_forward.5} parent=0 // pred_fallthru
    _
  // Predicated region
  $region6: #{dqn_forward.5} parent=0 // pred_check
    _
  $region7: #{dqn_forward.5} parent=0 // pred_check_branch
    %11 = sbr.rel (0) target = $region9
  $region8: #{dqn_forward.5} parent=0 // pred_region
    _
  $region9: #{dqn_forward.5} parent=0 // pred_fallthru
    _
  // Predicated region
  $region10: #{dqn_forward.5} parent=0 // pred_check
    _
  $region11: #{dqn_forward.5} parent=0 // pred_check_branch
    %13 = sbr.rel (0) target = $region13
  $region12: #{dqn_forward.5} parent=0 // pred_region
    _
  $region13: #{dqn_forward.5} parent=0 // pred_fallthru
    _
  %v15 = vld [vmem:[%s0] sm:$0x7]
  %v16 = vld [vmem:[%s1] sm:$0xf]
  %v17 = vld [vmem:[%s1 + $0x4] sm:$0xf]
  %v18 = vld [vmem:[%s1 + $0x8] sm:$0xf]
  %v19 = vld [vmem:[%s1 + $0xc] sm:$0xf]
  %v20 = vld [vmem:[%s1 + $0x10] sm:$0xf]
  %v21 = vld [vmem:[%s1 + $0x14] sm:$0xf]
  %v22 = vld [vmem:[%s1 + $0x18] sm:$0xf]
  %v23 = vld [vmem:[%s1 + $0x1c] sm:$0xf]
  %v24 = vld [vmem:[%s1 + $0x20] sm:$0xf]
  %v25 = vld [vmem:[%s1 + $0x24] sm:$0xf]
  %v26 = vld [vmem:[%s1 + $0x28] sm:$0xf]
  %v27 = vld [vmem:[%s1 + $0x2c] sm:$0xf]
  %v28 = vld [vmem:[%s1 + $0x30] sm:$0xf]
  %v29 = vld [vmem:[%s1 + $0x34] sm:$0xf]
  %v30 = vld [vmem:[%s1 + $0x38] sm:$0xf]
  %v31 = vld [vmem:[%s1 + $0x3c] sm:$0xf]
  %v32 = vld [vmem:[%s2] sm:$0x3f]
  %34 = vset.pattern.permute.xlu0 0
  %35 = vperm.xlu0 %34, %v32
  %v36 = vpop.permute.xlu0 %35
  %v54 = vunpack.c.l.b16 %v16
  %v55 = vunpack.c.l.b16 %v17
  %v56 = vunpack.c.l.b16 %v18
  %v57 = vunpack.c.l.b16 %v19
  %v58 = vunpack.c.l.b16 %v20
  %v59 = vunpack.c.l.b16 %v21
  %v60 = vunpack.c.l.b16 %v22
  %v61 = vunpack.c.l.b16 %v23
  %v62 = vunpack.c.l.b16 %v24
  %v63 = vunpack.c.l.b16 %v25
  %v64 = vunpack.c.l.b16 %v26
  %v65 = vunpack.c.l.b16 %v27
  %v66 = vunpack.c.l.b16 %v28
  %v67 = vunpack.c.l.b16 %v29
  %v68 = vunpack.c.l.b16 %v30
  %v69 = vunpack.c.l.b16 %v31
  %v70 = vpack.c.b16 %v55, %v54
  %v71 = vpack.c.b16 %v57, %v56
  %v72 = vpack.c.b16 %v59, %v58
  %v73 = vpack.c.b16 %v61, %v60
  %v74 = vpack.c.b16 %v63, %v62
  %v75 = vpack.c.b16 %v65, %v64
  %v76 = vpack.c.b16 %v67, %v66
  %v77 = vpack.c.b16 %v69, %v68
  %86 = vmatprep.subr.bf16.mxu0 0
  %87 = vmatpush1.bf16.msra.mxu0 %v70
  %88 = vmatprep.subr.bf16.mxu0 0
  %89 = vmatpush1.bf16.msra.mxu0 %v71
  %90 = vmatprep.subr.bf16.mxu0 0
  %91 = vmatpush1.bf16.msra.mxu0 %v72
  %92 = vmatprep.subr.bf16.mxu0 0
  %93 = vmatpush1.bf16.msra.mxu0 %v73
  %94 = vmatprep.subr.bf16.mxu0 0
  %95 = vmatpush1.bf16.msra.mxu0 %v74
  %96 = vmatprep.subr.bf16.mxu0 0
  %97 = vmatpush1.bf16.msra.mxu0 %v75
  %98 = vmatprep.subr.bf16.mxu0 0
  %99 = vmatpush1.bf16.msra.mxu0 %v76
  %100 = vmatprep.subr.bf16.mxu0 0
  %101 = vmatpush1.bf16.msra.mxu0 %v77
  %102 = vmatprep.subr.bf16.mxu0 0
  %103 = vmatpush1.bf16.msra.mxu0 0
  %104 = vmatprep.subr.bf16.mxu0 0
  %105 = vmatpush1.bf16.msra.mxu0 0
  %106 = vmatprep.subr.bf16.mxu0 0
  %107 = vmatpush1.bf16.msra.mxu0 0
  %108 = vmatprep.subr.bf16.mxu0 0
  %109 = vmatpush1.bf16.msra.mxu0 0
  %110 = vmatprep.subr.bf16.mxu0 0
  %111 = vmatpush1.bf16.msra.mxu0 0
  %112 = vmatprep.subr.bf16.mxu0 0
  %113 = vmatpush1.bf16.msra.mxu0 0
  %114 = vmatprep.subr.bf16.mxu0 0
  %115 = vmatpush1.bf16.msra.mxu0 0
  %116 = vmatprep.subr.bf16.mxu0 0
  %117 = vmatpush1.bf16.msra.mxu0 0
  %118 = vmatprep.mubr.bf16.mxu0 0
  %119 = vmatmul.mubr.bf16.gmra.mrb[0].mxu0 %v15
  %v120 = vpop.f32.mrb[0].mxu0
  %v121 = vadd.f32 %v36, %v120
  %v122 = vpop.f32.mrb[0].mxu0
  %v123 = vpop.f32.mrb[0].mxu0
  %v124 = vpop.f32.mrb[0].mxu0
  %125 = vdwg.mxu0
  %126 = vst [vmem:[%s3] sm:$0x3f] %v121
  // Predicated region
  $region14: #{dqn_forward.5} parent=0 // pred_check
    _
  $region15: #{dqn_forward.5} parent=0 // pred_check_branch
    %128 = sbr.rel (0) target = $region17
  $region16: #{dqn_forward.5} parent=0 // pred_region
    _
  $region17: #{dqn_forward.5} parent=0 // pred_fallthru
    _
  // Predicated region
  $region18: #{dqn_forward.5} parent=0 // pred_check
    _
  $region19: #{dqn_forward.5} parent=0 // pred_check_branch
    %130 = sbr.rel (0) target = $region21
  $region20: #{dqn_forward.5} parent=0 // pred_region
    _
  $region21: #{dqn_forward.5} parent=0 // pred_fallthru
    _

</llo_original>
